<compile_context>
chip_gen: v7x
topology: tpu7x:2x2x1
jax: 0.10.0
libtpu: 0.0.40
codegen_flags: <defaults>
</compile_context>

<pallas_src>
import functools

import numpy as np
import jax
import jax.numpy as jnp
from jax.experimental import pallas as pl
from jax.experimental.pallas import tpu as pltpu

EPS = 1e-5          # nn.LayerNorm default
BF16 = jnp.bfloat16
F32 = jnp.float32


# ----------------------------- helpers (traced inside kernels) ----------------
def _layer_norm(x, w, b):
    mu = jnp.mean(x, axis=-1, keepdims=True)
    var = jnp.mean((x - mu) ** 2, axis=-1, keepdims=True)
    return (x - mu) * jax.lax.rsqrt(var + EPS) * w + b


# ----------------------------- Pallas kernels ---------------------------------
def embed_assemble_kernel(xp_ref, zp_ref, w_ref, b_ref, cls_ref, pos_ref, o_ref):
    """Fused patch-embed matmul + bias + [cls | x | z] assembly + pos-embed add.

    The whole (S, D) token tile is built in registers and written with a single
    dense store (no masked partial stores at non-multiple-of-8 sublane offsets).
    """
    w = w_ref[...]                                               # (K, D) bf16
    b = b_ref[0]                                                 # (D,)   f32
    xt = jnp.dot(xp_ref[0], w, preferred_element_type=F32) + b   # (Nx, D) f32
    zt = jnp.dot(zp_ref[0], w, preferred_element_type=F32) + b   # (Nz, D) f32
    tok = jnp.concatenate([cls_ref[0], xt, zt], axis=0)          # (S, D) f32
    o_ref[0] = tok + pos_ref[0]


def blocks_kernel(x_ref, ln1w, ln1b, qkvw, qkvb, projw, projb,
                  ln2w, ln2b, f1w, f1b, f2w, f2b, normw, normb,
                  o_ref, act_ref, *, num_heads):
    """All transformer blocks for one batch row.

    grid = (B, depth); the running activation is carried in VMEM scratch
    (act_ref) across the depth axis; per-layer weight tiles are selected by the
    depth grid index (so the BlockSpec pipeline prefetches the next layer's
    weights during the current layer's compute).  The final LayerNorm is fused
    into the last depth step.
    """
    d = pl.program_id(1)
    last = pl.num_programs(1) - 1

    @pl.when(d == 0)
    def _():
        act_ref[...] = x_ref[0]

    S, D = act_ref.shape
    H = num_heads
    hd = D // H
    scale = float(hd) ** -0.5

    x = act_ref[...]                                             # (S, D) f32

    # ---------------- multi-head self-attention (pre-norm) -----------------
    xn = _layer_norm(x, ln1w[0, 0], ln1b[0, 0])                  # f32
    # Fused QKV: one lane-dense (S,D)x(D,3D) MXU matmul + one (1,3D) bias add.
    qkv = jnp.dot(xn.astype(BF16), qkvw[0],
                  preferred_element_type=F32) + qkvb[0, 0]       # (S, 3D) f32
    qkv_b16 = qkv.astype(BF16)

    # Head split: static lane slices stacked into a leading head-batch dim.
    q = jnp.stack([qkv_b16[:, 0 * D + h * hd: 0 * D + (h + 1) * hd]
                   for h in range(H)], axis=0)                   # (H, S, hd) bf16
    k = jnp.stack([qkv_b16[:, 1 * D + h * hd: 1 * D + (h + 1) * hd]
                   for h in range(H)], axis=0)
    v = jnp.stack([qkv_b16[:, 2 * D + h * hd: 2 * D + (h + 1) * hd]
                   for h in range(H)], axis=0)

    s = jnp.einsum('hqe,hke->hqk', q, k,
                   preferred_element_type=F32) * scale           # (H,S,S) f32
    s = s - jnp.max(s, axis=-1, keepdims=True)                   # fp32 softmax
    p = jnp.exp(s)
    p = p * pl.reciprocal(jnp.sum(p, axis=-1, keepdims=True), approx=True)

    ctx = jnp.einsum('hqk,hke->hqe', p.astype(BF16), v,
                     preferred_element_type=F32)                 # (H,S,hd) f32
    # Merge heads along lanes and do ONE full-K projection matmul.
    ctx2d = jnp.concatenate([ctx[h] for h in range(H)], axis=-1)  # (S, D) f32
    attn = jnp.dot(ctx2d.astype(BF16), projw[0],
                   preferred_element_type=F32) + projb[0, 0]     # (S, D) f32
    x = x + attn

    # ---------------------------- MLP (pre-norm) ---------------------------
    xn2 = _layer_norm(x, ln2w[0, 0], ln2b[0, 0])
    h1 = jnp.dot(xn2.astype(BF16), f1w[0], preferred_element_type=F32) + f1b[0, 0]
    h1 = jax.nn.gelu(h1, approximate=False)          # exact erf GELU (nn.GELU)
    h2 = jnp.dot(h1.astype(BF16), f2w[0], preferred_element_type=F32) + f2b[0, 0]
    out = x + h2

    act_ref[...] = out                    # carry residual stream to next layer

    @pl.when(d != last)
    def _():
        o_ref[0, 0] = out

    @pl.when(d == last)
    def _():
        # Fused final LayerNorm: matches `res[-1] = self.norm(xz)`.
        o_ref[0, 0] = _layer_norm(out, normw[0], normb[0])


# ----------------------------- wrappers ----------------------------------------
# 32 MiB scoped VMEM is plenty for this config and is below the physical VMEM of
# every chip (v5e/v6e: 128 MiB, v7x: 64 MiB).  Re-derive for large configs on v7x.
_VMEM_LIMIT = 32 * 1024 * 1024


def extract_patches(imgs, patch_size):
    # imgs: [B, C, H, W] NCHW.  Same ordering as Conv2d(stride=ps).flatten(2).T.
    B, C, Himg, Wimg = imgs.shape
    ps = patch_size
    Hp, Wp = Himg // ps, Wimg // ps
    p = imgs.reshape(B, C, Hp, ps, Wp, ps)
    p = p.transpose(0, 2, 4, 1, 3, 5).reshape(B, Hp * Wp, C * ps * ps)
    return p.astype(BF16)           # bf16 halves DMA into the embed kernel


def embed_and_assemble(xp, zp, params):
    B, Nx, K = xp.shape
    Nz = zp.shape[1]
    D = params['patch_w'].shape[1]
    S = Nx + Nz + 1
    cost = pl.CostEstimate(
        flops=int(2 * B * (Nx + Nz) * K * D),
        transcendentals=0,
        bytes_accessed=int(B * (Nx + Nz) * K * 2 + K * D * 2
                           + B * S * D * 4 + S * D * 4))
    return pl.pallas_call(
        embed_assemble_kernel,
        out_shape=jax.ShapeDtypeStruct((B, S, D), F32),
        grid=(B,),
        in_specs=[
            pl.BlockSpec((1, Nx, K), lambda b: (b, 0, 0)),
            pl.BlockSpec((1, Nz, K), lambda b: (b, 0, 0)),
            pl.BlockSpec((K, D), lambda b: (0, 0)),
            pl.BlockSpec((1, D), lambda b: (0, 0)),
            pl.BlockSpec((1, 1, D), lambda b: (0, 0, 0)),
            pl.BlockSpec((1, S, D), lambda b: (0, 0, 0)),
        ],
        out_specs=pl.BlockSpec((1, S, D), lambda b: (b, 0, 0)),
        compiler_params=pltpu.CompilerParams(
            dimension_semantics=("parallel",), vmem_limit_bytes=_VMEM_LIMIT),
        cost_estimate=cost,
    )(xp, zp, params['patch_w'], params['patch_b'],
      params['cls_token'], params['pos_embed'])


def _weight_spec(arr):
    """Stacked per-layer weight: block is one layer slice, indexed by depth."""
    nrest = arr.ndim - 1

    def imap(b, d):
        return (d,) + (0,) * nrest

    return pl.BlockSpec((1,) + arr.shape[1:], imap)


def run_blocks(x, blocks, norm_w, norm_b, *, num_heads):
    """Run ALL transformer blocks (+ final LayerNorm) in one pallas_call.

    Returns a (depth, B, S, D) f32 array of per-layer outputs; the last layer
    already carries the final LayerNorm.
    """
    B, S, D = x.shape
    depth = blocks['qkv_w'].shape[0]
    Hid = blocks['fc1_w'].shape[2]

    names = ['ln1_w', 'ln1_b', 'qkv_w', 'qkv_b', 'proj_w', 'proj_b',
             'ln2_w', 'ln2_b', 'fc1_w', 'fc1_b', 'fc2_w', 'fc2_b']
    wlist = [blocks[n] for n in names]

    in_specs = [pl.BlockSpec((1, S, D), lambda b, d: (b, 0, 0))]
    in_specs += [_weight_spec(w) for w in wlist]
    in_specs += [pl.BlockSpec((1, D), lambda b, d: (0, 0)),
                 pl.BlockSpec((1, D), lambda b, d: (0, 0))]

    weight_bytes = sum(int(np.prod(w.shape)) * w.dtype.itemsize for w in wlist)
    hd = D // num_heads
    matmul_flops = (2 * S * D * 3 * D          # fused QKV
                    + 4 * num_heads * S * S * hd   # scores + ctx
                    + 2 * S * D * D            # output projection
                    + 4 * S * D * Hid)         # MLP
    cost = pl.CostEstimate(
        flops=int(B * depth * matmul_flops),
        transcendentals=int(B * depth * (num_heads * S * S + S * Hid)),
        bytes_accessed=int(B * S * D * 4 + B * weight_bytes
                           + depth * B * S * D * 4))

    return pl.pallas_call(
        functools.partial(blocks_kernel, num_heads=num_heads),
        out_shape=jax.ShapeDtypeStruct((depth, B, S, D), F32),
        grid=(B, depth),
        in_specs=in_specs,
        out_specs=pl.BlockSpec((1, 1, S, D), lambda b, d: (d, b, 0, 0)),
        scratch_shapes=[pltpu.VMEM((S, D), F32)],
        compiler_params=pltpu.CompilerParams(
            dimension_semantics=("parallel", "arbitrary"),
            vmem_limit_bytes=_VMEM_LIMIT),
        cost_estimate=cost,
    )(x, *wlist, norm_w, norm_b)


# ----------------------------- parameters --------------------------------------
def get_sinusoid_encoding_table(n_position, d_hid, cls_token=False):
    position = np.arange(n_position, dtype=np.float64)[:, None]
    div = np.power(10000.0, 2.0 * (np.arange(d_hid) // 2) / d_hid)[None, :]
    table = position / div
    table[:, 0::2] = np.sin(table[:, 0::2])
    table[:, 1::2] = np.cos(table[:, 1::2])
    if cls_token:
        table = np.concatenate([np.zeros((1, d_hid)), table], axis=0)
    return table.astype(np.float32)


def init_params(key, *, embed_dim, num_heads, mlp_ratio, depth, in_chans,
                patch_size, num_patches):
    D = embed_dim
    Hid = int(D * mlp_ratio)
    K = in_chans * patch_size * patch_size
    keys = iter(jax.random.split(key, 2 + 4 * depth))

    def tn(shape, std=0.02):
        return jax.random.truncated_normal(next(keys), -2.0, 2.0, shape, F32) * std

    patch_w = tn((D, in_chans, patch_size, patch_size))
    params = {
        # conv weight re-laid-out as a (K, D) bf16 matmul weight
        'patch_w': patch_w.reshape(D, K).T.astype(BF16),
        'patch_b': jnp.zeros((1, D), F32),
        'cls_token': tn((1, 1, D)),
        'pos_embed': jnp.asarray(
            get_sinusoid_encoding_table(num_patches, D, cls_token=True))[None],
        'norm_w': jnp.ones((1, D), F32),
        'norm_b': jnp.zeros((1, D), F32),
    }

    # Per-layer weights stacked along a leading layer axis (depth fusion).
    # QKV columns are laid out [q | k | v] with head-major sub-columns.
    qkv_w = jnp.stack([tn((D, 3 * D)) for _ in range(depth)])
    proj_w = jnp.stack([tn((D, D)) for _ in range(depth)])
    fc1_w = jnp.stack([tn((D, Hid)) for _ in range(depth)])
    fc2_w = jnp.stack([tn((Hid, D)) for _ in range(depth)])
    params['blocks'] = {
        'ln1_w': jnp.ones((depth, 1, D), F32), 'ln1_b': jnp.zeros((depth, 1, D), F32),
        'qkv_w': qkv_w.astype(BF16),            # (depth, D, 3D)
        'qkv_b': jnp.zeros((depth, 1, 3 * D), F32),
        'proj_w': proj_w.astype(BF16),          # (depth, D, D)
        'proj_b': jnp.zeros((depth, 1, D), F32),
        'ln2_w': jnp.ones((depth, 1, D), F32), 'ln2_b': jnp.zeros((depth, 1, D), F32),
        'fc1_w': fc1_w.astype(BF16),            # (depth, D, Hid)
        'fc1_b': jnp.zeros((depth, 1, Hid), F32),
        'fc2_w': fc2_w.astype(BF16),            # (depth, Hid, D)
        'fc2_b': jnp.zeros((depth, 1, D), F32),
    }
    return params


# ----------------------------- forward ------------------------------------------
def vision_transformer_forward(params, z, x, *, patch_size, num_heads):
    xp = extract_patches(x, patch_size)   # search-region patches  (B, Nx, K)
    zp = extract_patches(z, patch_size)   # template patches       (B, Nz, K)
    xz = embed_and_assemble(xp, zp, params)            # [cls | x | z] + pos
    stacked = run_blocks(xz, params['blocks'], params['norm_w'], params['norm_b'],
                         num_heads=num_heads)          # (depth, B, S, D)
    # res[i] = output of block i; res[-1] carries the final LayerNorm (fused).
    return [stacked[i] for i in range(stacked.shape[0])]


# ----------------------------- main ---------------------------------------------
if __name__ == "__main__":
    # Small, forward-consistent shapes; embed_dim=128 keeps every lane dim dense.
    template_size, search_size, patch_size = 16, 16, 8
    embed_dim, num_heads, mlp_ratio, depth = 128, 4, 4, 2
    in_chans, B = 3, 2
    num_patches = (search_size // patch_size) ** 2 + (template_size // patch_size) ** 2

    key = jax.random.PRNGKey(0)
    kp, kz, kx = jax.random.split(key, 3)
    params = init_params(kp, embed_dim=embed_dim, num_heads=num_heads,
                         mlp_ratio=mlp_ratio, depth=depth, in_chans=in_chans,
                         patch_size=patch_size, num_patches=num_patches)

    z = jax.random.normal(kz, (B, in_chans, template_size, template_size), F32)
    x = jax.random.normal(kx, (B, in_chans, search_size, search_size), F32)

    res = vision_transformer_forward(params, z, x,
                                     patch_size=patch_size, num_heads=num_heads)
    for r in res:
        jax.block_until_ready(r)

    expected_seq = num_patches + 1
    assert len(res) == depth
    assert all(r.shape == (B, expected_seq, embed_dim) for r in res)
    assert all(bool(jnp.all(jnp.isfinite(r))) for r in res)
    print("KERNEL_OK")
</pallas_src>

<mosaic_0001>
module attributes {stable_mosaic.version = 11 : i64} {
  func.func @embed_assemble_kernel(%arg0: i32, %arg1: memref<1x4x192xbf16, #tpu.memory_space<vmem>>, %arg2: memref<1x4x192xbf16, #tpu.memory_space<vmem>>, %arg3: memref<192x128xbf16, #tpu.memory_space<vmem>>, %arg4: memref<1x128xf32, #tpu.memory_space<vmem>>, %arg5: memref<1x1x128xf32, #tpu.memory_space<vmem>>, %arg6: memref<1x9x128xf32, #tpu.memory_space<vmem>>, %arg7: memref<1x9x128xf32, #tpu.memory_space<vmem>>) attributes {dimension_semantics = [#tpu.dimension_semantics<parallel>], iteration_bounds = array<i64: 2>, scalar_prefetch = 0 : i64, scratch_operands = 0 : i64, tpu.core_type = #tpu.core_type<tc>, window_params = [{transform_indices = @transform_0, window_bounds = array<i64: 1, 4, 192>}, {transform_indices = @transform_1, window_bounds = array<i64: 1, 4, 192>}, {pipeline_mode = #tpu.pipeline_mode<synchronous>, transform_indices = @transform_2, window_bounds = array<i64: 192, 128>}, {pipeline_mode = #tpu.pipeline_mode<synchronous>, transform_indices = @transform_3, window_bounds = array<i64: 1, 128>}, {pipeline_mode = #tpu.pipeline_mode<synchronous>, transform_indices = @transform_4, window_bounds = array<i64: 1, 1, 128>}, {pipeline_mode = #tpu.pipeline_mode<synchronous>, transform_indices = @transform_5, window_bounds = array<i64: 1, 9, 128>}, {transform_indices = @transform_6, window_bounds = array<i64: 1, 9, 128>}]} {
    %c0 = arith.constant 0 : index
    %c0_0 = arith.constant 0 : index
    %0 = vector.load %arg3[%c0, %c0_0] : memref<192x128xbf16, #tpu.memory_space<vmem>>, vector<192x128xbf16>
    %c0_1 = arith.constant 0 : index
    %c0_2 = arith.constant 0 : index
    %1 = vector.load %arg4[%c0_1, %c0_2] : memref<1x128xf32, #tpu.memory_space<vmem>>, vector<1x128xf32>
    %2 = vector.shape_cast %1 : vector<1x128xf32> to vector<128xf32>
    %c0_3 = arith.constant 0 : index
    %c0_4 = arith.constant 0 : index
    %c0_5 = arith.constant 0 : index
    %3 = vector.load %arg1[%c0_3, %c0_4, %c0_5] : memref<1x4x192xbf16, #tpu.memory_space<vmem>>, vector<1x4x192xbf16>
    %4 = vector.shape_cast %3 : vector<1x4x192xbf16> to vector<4x192xbf16>
    %cst = arith.constant dense<0.000000e+00> : vector<4x128xf32>
    %5 = tpu.matmul %4, %0, %cst {dimension_numbers = #tpu.dot_dimension_numbers<[1], [0], [0], [1], [0, 0, 1, 1], [], []>} : vector<4x192xbf16>, vector<192x128xbf16>, vector<4x128xf32> -> vector<4x128xf32>
    %6 = vector.shape_cast %2 : vector<128xf32> to vector<1x128xf32>
    %7 = vector.broadcast %6 : vector<1x128xf32> to vector<4x128xf32>
    %8 = arith.addf %5, %7 : vector<4x128xf32>
    %c0_6 = arith.constant 0 : index
    %c0_7 = arith.constant 0 : index
    %c0_8 = arith.constant 0 : index
    %9 = vector.load %arg2[%c0_6, %c0_7, %c0_8] : memref<1x4x192xbf16, #tpu.memory_space<vmem>>, vector<1x4x192xbf16>
    %10 = vector.shape_cast %9 : vector<1x4x192xbf16> to vector<4x192xbf16>
    %cst_9 = arith.constant dense<0.000000e+00> : vector<4x128xf32>
    %11 = tpu.matmul %10, %0, %cst_9 {dimension_numbers = #tpu.dot_dimension_numbers<[1], [0], [0], [1], [0, 0, 1, 1], [], []>} : vector<4x192xbf16>, vector<192x128xbf16>, vector<4x128xf32> -> vector<4x128xf32>
    %12 = vector.shape_cast %2 : vector<128xf32> to vector<1x128xf32>
    %13 = vector.broadcast %12 : vector<1x128xf32> to vector<4x128xf32>
    %14 = arith.addf %11, %13 : vector<4x128xf32>
    %c0_10 = arith.constant 0 : index
    %c0_11 = arith.constant 0 : index
    %c0_12 = arith.constant 0 : index
    %15 = vector.load %arg5[%c0_10, %c0_11, %c0_12] : memref<1x1x128xf32, #tpu.memory_space<vmem>>, vector<1x1x128xf32>
    %16 = vector.shape_cast %15 : vector<1x1x128xf32> to vector<1x128xf32>
    %17 = tpu.concatenate %16, %8, %14 in 0 : vector<1x128xf32>, vector<4x128xf32>, vector<4x128xf32> -> vector<9x128xf32>
    %c0_13 = arith.constant 0 : index
    %c0_14 = arith.constant 0 : index
    %c0_15 = arith.constant 0 : index
    %18 = vector.load %arg6[%c0_13, %c0_14, %c0_15] : memref<1x9x128xf32, #tpu.memory_space<vmem>>, vector<1x9x128xf32>
    %19 = vector.shape_cast %18 : vector<1x9x128xf32> to vector<9x128xf32>
    %20 = arith.addf %17, %19 : vector<9x128xf32>
    %c0_16 = arith.constant 0 : index
    %c0_17 = arith.constant 0 : index
    %c0_18 = arith.constant 0 : index
    %21 = vector.load %arg7[%c0_16, %c0_17, %c0_18] : memref<1x9x128xf32, #tpu.memory_space<vmem>>, vector<1x9x128xf32>
    %22 = vector.shape_cast %21 : vector<1x9x128xf32> to vector<9x128xf32>
    %23 = vector.shape_cast %20 : vector<9x128xf32> to vector<1x9x128xf32>
    tpu.vector_store %arg7[%c0_16, %c0_17, %c0_18], %23 {strides = array<i32>} : memref<1x9x128xf32, #tpu.memory_space<vmem>>, vector<1x9x128xf32>,
    return
  }
  func.func @transform_0(%arg0: i32) -> (i32, i32, i32) {
    %c0_i32 = arith.constant 0 : i32
    %c0_i32_0 = arith.constant 0 : i32
    %c0_i32_1 = arith.constant 0 : i32
    return %arg0, %c0_i32, %c0_i32_0 : i32, i32, i32
  }
  func.func @transform_1(%arg0: i32) -> (i32, i32, i32) {
    %c0_i32 = arith.constant 0 : i32
    %c0_i32_0 = arith.constant 0 : i32
    %c0_i32_1 = arith.constant 0 : i32
    return %arg0, %c0_i32, %c0_i32_0 : i32, i32, i32
  }
  func.func @transform_2(%arg0: i32) -> (i32, i32) {
    %c0_i32 = arith.constant 0 : i32
    %c0_i32_0 = arith.constant 0 : i32
    %c0_i32_1 = arith.constant 0 : i32
    return %c0_i32, %c0_i32_0 : i32, i32
  }
  func.func @transform_3(%arg0: i32) -> (i32, i32) {
    %c0_i32 = arith.constant 0 : i32
    %c0_i32_0 = arith.constant 0 : i32
    %c0_i32_1 = arith.constant 0 : i32
    return %c0_i32, %c0_i32_0 : i32, i32
  }
  func.func @transform_4(%arg0: i32) -> (i32, i32, i32) {
    %c0_i32 = arith.constant 0 : i32
    %c0_i32_0 = arith.constant 0 : i32
    %c0_i32_1 = arith.constant 0 : i32
    %c0_i32_2 = arith.constant 0 : i32
    return %c0_i32, %c0_i32_0, %c0_i32_1 : i32, i32, i32
  }
  func.func @transform_5(%arg0: i32) -> (i32, i32, i32) {
    %c0_i32 = arith.constant 0 : i32
    %c0_i32_0 = arith.constant 0 : i32
    %c0_i32_1 = arith.constant 0 : i32
    %c0_i32_2 = arith.constant 0 : i32
    return %c0_i32, %c0_i32_0, %c0_i32_1 : i32, i32, i32
  }
  func.func @transform_6(%arg0: i32) -> (i32, i32, i32) {
    %c0_i32 = arith.constant 0 : i32
    %c0_i32_0 = arith.constant 0 : i32
    %c0_i32_1 = arith.constant 0 : i32
    return %arg0, %c0_i32, %c0_i32_0 : i32, i32, i32
  }
}

</mosaic_0001>

<llo_original>
// kernel: tpu_custom_call.1
$region0: #{tpu_custom_call.1}
  #allocation0 [shape = 'u32[]', space=smem, size = 0x4, offset = 0x4, fixed_abs, tag = 'smem constant byte address 0x4 - core index']
  #allocation1 [shape = 'u32[144,128]{1,0:T(1,128)}', space=vmem, size = 0x12000, scoped, tag = 'internal scratch']
  %s0 = inlined_call_operand.vmem [shape: bf16[2,4,192], index: 0, kind: input, shape index: {}]
  %s1 = inlined_call_operand.vmem [shape: bf16[2,4,192], index: 1, kind: input, shape index: {}]
  %s2 = inlined_call_operand.hbm [shape: bf16[192,128], index: 2, kind: input, shape index: {}]
  %s3 = inlined_call_operand.vmem [shape: f32[1,128], index: 3, kind: input, shape index: {}]
  %s4 = inlined_call_operand.vmem [shape: f32[1,1,128], index: 4, kind: input, shape index: {}]
  %s5 = inlined_call_operand.vmem [shape: f32[1,9,128], index: 5, kind: input, shape index: {}]
  %s6 = inlined_call_operand.vmem [shape: f32[2,9,128], index: 6, kind: output, shape index: {}]
  %s7 = sld [smem:[#allocation0]]
  $region61: #{tpu_custom_call.1} parent=0
    _
  %s9 = ssub.s32 1, %s7
  %s10 = scalar_select 0, %s9, %s7
  $region1: #{tpu_custom_call.1} parent=0
    #allocation2 [shape = 'u8[49152]{0}', space=vmem, size = 0xc000, scoped, tag = 'input window, operand 2, single buffered']
    #allocation3 [shape = 's32[2]{0}', space=sflag, size = 0x8, scoped, tag = 'scoped memory for tpu_custom_call.1']
    %11 = vsyncpa [#allocation3], 0
    loop: start=0, step=1, limit=4
    $region2: #{tpu_custom_call.1} parent=1 // loop_pre_header
      _
    $region3: #{tpu_custom_call.1} parent=1 // loop_header
      %s13 = sphi 0, %s17
      %p14 = scmp.ge.s32.totalorder %s13, 4
      %s23 = sphi 0, %s25
      %s26 = sphi 0, %s23
      %s27 = sphi 0, %s26
      %s43 = sphi 0, %s27
      %s49 = sphi 0, %s51
      %s52 = sphi 0, %s49
      %s53 = sphi 0, %s52
      %s69 = sphi 0, %s53
      %s73 = sphi 0, %s73
      %s75 = sphi 0, %s73
      %s76 = sphi 0, %s75
      %s90 = sphi 0, %s76
      %s94 = sphi 0, %s94
      %s96 = sphi 0, %s94
      %s97 = sphi 0, %s96
      %s111 = sphi 0, %s97
      %s115 = sphi 0, %s115
      %s117 = sphi 0, %s115
      %s118 = sphi 0, %s117
      %s132 = sphi 0, %s118
      %s136 = sphi 0, %s136
      %s138 = sphi 0, %s136
      %s139 = sphi 0, %s138
      %s153 = sphi 0, %s139
      %s159 = sphi 0, %s161
      %s162 = sphi 0, %s159
      %s163 = sphi 0, %s162
      %s179 = sphi 0, %s163
    $region4: #{tpu_custom_call.1} parent=1 // loop_header_branch
      %16 = sbr.rel (%p14) target = $region8
    $region5: #{tpu_custom_call.1} parent=1 // loop_body
      %s18 = ssub.s32 %s13, 1
      %s19 = ssub.s32 %s13, 2
      %s20 = sadd.s32 %s13, 1
      %s21 = ssub.s32 %s13, %s20
      %p22 = scmp.eq.s32.totalorder %s21, 0
      %s24 = sadd.s32 %s23, 1
      %s25 = scalar_select %p22, %s23, %s24
      %p28 = pneg %p22
      %p29 = scmp.eq.s32.totalorder %s13, 1
      %p30 = por %p28, %p29
      %p31 = scmp.ne.s32.totalorder %s23, %s26
      %p32 = scmp.eq.s32.totalorder %s13, 0
      %p33 = por %p31, %p32
      %p34 = scmp.ne.s32.totalorder %s23, %s26
      %p35 = scmp.eq.s32.totalorder %s18, 1
      %p36 = por %p34, %p35
      %p37 = scmp.ne.s32.totalorder %s26, %s27
      %p38 = scmp.eq.s32.totalorder %s18, 0
      %p39 = por %p37, %p38
      %p40 = scmp.ne.s32.totalorder %s26, %s27
      %p41 = scmp.eq.s32.totalorder %s19, 1
      %p42 = por %p40, %p41
      %p44 = scmp.ne.s32.totalorder %s27, %s43
      %p45 = scmp.eq.s32.totalorder %s19, 0
      %p46 = por %p44, %p45
      %s47 = ssub.s32 %s13, %s20
      %p48 = scmp.eq.s32.totalorder %s47, 0
      %s50 = sadd.s32 %s49, 1
      %s51 = scalar_select %p48, %s49, %s50
      %p54 = pneg %p48
      %p55 = scmp.eq.s32.totalorder %s13, 1
      %p56 = por %p54, %p55
      %p57 = scmp.ne.s32.totalorder %s49, %s52
      %p58 = scmp.eq.s32.totalorder %s13, 0
      %p59 = por %p57, %p58
      %p60 = scmp.ne.s32.totalorder %s49, %s52
      %p61 = scmp.eq.s32.totalorder %s18, 1
      %p62 = por %p60, %p61
      %p63 = scmp.ne.s32.totalorder %s52, %s53
      %p64 = scmp.eq.s32.totalorder %s18, 0
      %p65 = por %p63, %p64
      %p66 = scmp.ne.s32.totalorder %s52, %s53
      %p67 = scmp.eq.s32.totalorder %s19, 1
      %p68 = por %p66, %p67
      %p70 = scmp.ne.s32.totalorder %s53, %s69
      %p71 = scmp.eq.s32.totalorder %s19, 0
      %p72 = por %p70, %p71
      %s74 = sadd.s32 %s73, 1
      %p77 = scmp.eq.s32.totalorder %s13, 1
      %p78 = scmp.ne.s32.totalorder %s73, %s75
      %p79 = scmp.eq.s32.totalorder %s13, 0
      %p80 = por %p78, %p79
      %p81 = scmp.ne.s32.totalorder %s73, %s75
      %p82 = scmp.eq.s32.totalorder %s18, 1
      %p83 = por %p81, %p82
      %p84 = scmp.ne.s32.totalorder %s75, %s76
      %p85 = scmp.eq.s32.totalorder %s18, 0
      %p86 = por %p84, %p85
      %p87 = scmp.ne.s32.totalorder %s75, %s76
      %p88 = scmp.eq.s32.totalorder %s19, 1
      %p89 = por %p87, %p88
      %p91 = scmp.ne.s32.totalorder %s76, %s90
      %p92 = scmp.eq.s32.totalorder %s19, 0
      %p93 = por %p91, %p92
      %s95 = sadd.s32 %s94, 1
      %p98 = scmp.eq.s32.totalorder %s13, 1
      %p99 = scmp.ne.s32.totalorder %s94, %s96
      %p100 = scmp.eq.s32.totalorder %s13, 0
      %p101 = por %p99, %p100
      %p102 = scmp.ne.s32.totalorder %s94, %s96
      %p103 = scmp.eq.s32.totalorder %s18, 1
      %p104 = por %p102, %p103
      %p105 = scmp.ne.s32.totalorder %s96, %s97
      %p106 = scmp.eq.s32.totalorder %s18, 0
      %p107 = por %p105, %p106
      %p108 = scmp.ne.s32.totalorder %s96, %s97
      %p109 = scmp.eq.s32.totalorder %s19, 1
      %p110 = por %p108, %p109
      %p112 = scmp.ne.s32.totalorder %s97, %s111
      %p113 = scmp.eq.s32.totalorder %s19, 0
      %p114 = por %p112, %p113
      %s116 = sadd.s32 %s115, 1
      %p119 = scmp.eq.s32.totalorder %s13, 1
      %p120 = scmp.ne.s32.totalorder %s115, %s117
      %p121 = scmp.eq.s32.totalorder %s13, 0
      %p122 = por %p120, %p121
      %p123 = scmp.ne.s32.totalorder %s115, %s117
      %p124 = scmp.eq.s32.totalorder %s18, 1
      %p125 = por %p123, %p124
      %p126 = scmp.ne.s32.totalorder %s117, %s118
      %p127 = scmp.eq.s32.totalorder %s18, 0
      %p128 = por %p126, %p127
      %p129 = scmp.ne.s32.totalorder %s117, %s118
      %p130 = scmp.eq.s32.totalorder %s19, 1
      %p131 = por %p129, %p130
      %p133 = scmp.ne.s32.totalorder %s118, %s132
      %p134 = scmp.eq.s32.totalorder %s19, 0
      %p135 = por %p133, %p134
      %s137 = sadd.s32 %s136, 1
      %p140 = scmp.eq.s32.totalorder %s13, 1
      %p141 = scmp.ne.s32.totalorder %s136, %s138
      %p142 = scmp.eq.s32.totalorder %s13, 0
      %p143 = por %p141, %p142
      %p144 = scmp.ne.s32.totalorder %s136, %s138
      %p145 = scmp.eq.s32.totalorder %s18, 1
      %p146 = por %p144, %p145
      %p147 = scmp.ne.s32.totalorder %s138, %s139
      %p148 = scmp.eq.s32.totalorder %s18, 0
      %p149 = por %p147, %p148
      %p150 = scmp.ne.s32.totalorder %s138, %s139
      %p151 = scmp.eq.s32.totalorder %s19, 1
      %p152 = por %p150, %p151
      %p154 = scmp.ne.s32.totalorder %s139, %s153
      %p155 = scmp.eq.s32.totalorder %s19, 0
      %p156 = por %p154, %p155
      %s157 = ssub.s32 %s13, %s20
      %p158 = scmp.eq.s32.totalorder %s157, 0
      %s160 = sadd.s32 %s159, 1
      %s161 = scalar_select %p158, %s159, %s160
      %p164 = pneg %p158
      %p165 = scmp.eq.s32.totalorder %s13, 1
      %p166 = por %p164, %p165
      %p167 = scmp.ne.s32.totalorder %s159, %s162
      %p168 = scmp.eq.s32.totalorder %s13, 0
      %p169 = por %p167, %p168
      %p170 = scmp.ne.s32.totalorder %s159, %s162
      %p171 = scmp.eq.s32.totalorder %s18, 1
      %p172 = por %p170, %p171
      %p173 = scmp.ne.s32.totalorder %s162, %s163
      %p174 = scmp.eq.s32.totalorder %s18, 0
      %p175 = por %p173, %p174
      %p176 = scmp.ne.s32.totalorder %s162, %s163
      %p177 = scmp.eq.s32.totalorder %s19, 1
      %p178 = por %p176, %p177
      %p180 = scmp.ne.s32.totalorder %s163, %s179
      %p181 = scmp.eq.s32.totalorder %s19, 0
      %p182 = por %p180, %p181
      %p183 = scmp.le.s32.totalorder 1, %s13
      %p184 = scmp.lt.s32.totalorder %s13, 3
      %p185 = pnand %p183, %p184
      %p186 = pneg %p185
      // Predicated region
      $region9: #{tpu_custom_call.1} parent=5 // pred_check
        _
      $region10: #{tpu_custom_call.1} parent=5 // pred_check_branch
        %188 = sbr.rel (%p185) target = $region12
      $region11: #{tpu_custom_call.1} parent=5 // pred_region
        %s189 = ssub.s32 %s13, 1
        // Predicated region
        $region13: #{tpu_custom_call.1} parent=11 // pred_check
          %p190 = pneg %p86
        $region14: #{tpu_custom_call.1} parent=11 // pred_check_branch
          %192 = sbr.rel (%p190) target = $region16
        $region15: #{tpu_custom_call.1} parent=11 // pred_region
          %s194 = ssub.s32 1536, 1536
          %195 = vsyncadd [#allocation3], %s194
          %s196 = sshll.u32 [#allocation2], 4
          %s197 = int_to_ptr.vmem [resolvable:$true] %s196
          %202 = dma.hbm_to_vmem [thread:$0]  %s2, 1536, %s197, [#allocation3], 64, 64, 4
        $region16: #{tpu_custom_call.1} parent=11 // pred_fallthru
          _
        // Predicated region
        $region17: #{tpu_custom_call.1} parent=11 // pred_check
          %p203 = pneg %p107
        $region18: #{tpu_custom_call.1} parent=11 // pred_check_branch
          %205 = sbr.rel (%p203) target = $region20
        $region19: #{tpu_custom_call.1} parent=11 // pred_region
          _
        $region20: #{tpu_custom_call.1} parent=11 // pred_fallthru
          _
        // Predicated region
        $region21: #{tpu_custom_call.1} parent=11 // pred_check
          %p206 = pneg %p128
        $region22: #{tpu_custom_call.1} parent=11 // pred_check_branch
          %208 = sbr.rel (%p206) target = $region24
        $region23: #{tpu_custom_call.1} parent=11 // pred_region
          _
        $region24: #{tpu_custom_call.1} parent=11 // pred_fallthru
          _
        // Predicated region
        $region25: #{tpu_custom_call.1} parent=11 // pred_check
          %p209 = pneg %p149
        $region26: #{tpu_custom_call.1} parent=11 // pred_check_branch
          %211 = sbr.rel (%p209) target = $region28
        $region27: #{tpu_custom_call.1} parent=11 // pred_region
          _
        $region28: #{tpu_custom_call.1} parent=11 // pred_fallthru
          _
      $region12: #{tpu_custom_call.1} parent=5 // pred_fallthru
        _
      %p212 = scmp.lt.s32.totalorder %s13, 2
      // Predicated region
      $region29: #{tpu_custom_call.1} parent=5 // pred_check
        %p213 = pneg %p212
      $region30: #{tpu_custom_call.1} parent=5 // pred_check_branch
        %215 = sbr.rel (%p213) target = $region32
      $region31: #{tpu_custom_call.1} parent=5 // pred_region
        // Predicated region
        $region33: #{tpu_custom_call.1} parent=31 // pred_check
          %p216 = pneg %p33
        $region34: #{tpu_custom_call.1} parent=31 // pred_check_branch
          %218 = sbr.rel (%p216) target = $region36
        $region35: #{tpu_custom_call.1} parent=31 // pred_region
          %p219 = scmp.lt.s32.totalorder %s13, 1
          %s220 = scalar_select %p219, %s13, 1
          %s221 = smul.addr %s220, 2
          %s222 = smul.addr %s221, 2
          %s223 = scalar_lea.vmem %s0, %s222
        $region36: #{tpu_custom_call.1} parent=31 // pred_fallthru
          _
        // Predicated region
        $region37: #{tpu_custom_call.1} parent=31 // pred_check
          %p224 = pneg %p59
        $region38: #{tpu_custom_call.1} parent=31 // pred_check_branch
          %226 = sbr.rel (%p224) target = $region40
        $region39: #{tpu_custom_call.1} parent=31 // pred_region
          %p227 = scmp.lt.s32.totalorder %s13, 1
          %s228 = scalar_select %p227, %s13, 1
          %s229 = smul.addr %s228, 2
          %s230 = smul.addr %s229, 2
          %s231 = scalar_lea.vmem %s1, %s230
        $region40: #{tpu_custom_call.1} parent=31 // pred_fallthru
          _
      $region32: #{tpu_custom_call.1} parent=5 // pred_fallthru
        _
      %p232 = scmp.le.s32.totalorder 1, %s13
      %p233 = scmp.lt.s32.totalorder %s13, 3
      %p234 = pnand %p232, %p233
      %p235 = pneg %p234
      // Predicated region
      $region41: #{tpu_custom_call.1} parent=5 // pred_check
        _
      $region42: #{tpu_custom_call.1} parent=5 // pred_check_branch
        %237 = sbr.rel (%p234) target = $region44
      $region43: #{tpu_custom_call.1} parent=5 // pred_region
        %s238 = ssub.s32 %s13, 1
        // Predicated region
        $region45: #{tpu_custom_call.1} parent=43 // pred_check
          %p239 = pneg %p86
        $region46: #{tpu_custom_call.1} parent=43 // pred_check_branch
          %241 = sbr.rel (%p239) target = $region48
        $region47: #{tpu_custom_call.1} parent=43 // pred_region
          %242 = dma.done [#allocation3], 1536
        $region48: #{tpu_custom_call.1} parent=43 // pred_fallthru
          _
        %p243 = scmp.lt.s32.totalorder %s18, 1
        %s244 = scalar_select %p243, %s18, 1
        %s245 = smul.addr %s244, 2
        %s246 = smul.addr %s245, 2
        %s247 = scalar_lea.vmem %s0, %s246
        %p248 = pneg %p39
        %p249 = pneg %p36
        %p250 = scmp.lt.s32.totalorder %s18, 1
        %s251 = scalar_select %p250, %s18, 1
        %s252 = smul.addr %s251, 2
        %s253 = smul.addr %s252, 2
        %s254 = scalar_lea.vmem %s1, %s253
        %p255 = pneg %p65
        %p256 = pneg %p62
        %p257 = pneg %p86
        %p258 = pneg %p83
        %p259 = pneg %p107
        %p260 = pneg %p104
        %p261 = pneg %p128
        %p262 = pneg %p125
        %p263 = pneg %p149
        %p264 = pneg %p146
        %p265 = pneg %p175
        %p266 = pneg %p172
        %p267 = scmp.lt.s32.totalorder %s18, 1
        %s268 = scalar_select %p267, %s18, 1
        %s269 = smul.addr %s268, 2
        %s270 = smul.addr %s269, 8
        %s271 = scalar_lea.vmem %s6, %s270
        %p272 = scmp.lt.s32.totalorder %s18, 1
        %s273 = scalar_select %p272, %s18, 1
        %s274 = smul.addr %s273, 2
        %s275 = smul.addr %s274, 2
        %s276 = scalar_lea.vmem %s0, %s275
        %p277 = scmp.lt.s32.totalorder %s18, 1
        %s278 = scalar_select %p277, %s18, 1
        %s279 = smul.addr %s278, 2
        %s280 = smul.addr %s279, 2
        %s281 = scalar_lea.vmem %s1, %s280
        %p282 = scmp.lt.s32.totalorder %s18, 1
        %s283 = scalar_select %p282, %s18, 1
        %s284 = smul.addr %s283, 2
        %s285 = smul.addr %s284, 8
        %s286 = scalar_lea.vmem %s6, %s285
        %v288 = vld [vmem:[#allocation2] sm:$0xf]
        %v289 = vld [vmem:[#allocation2 + $0x4] sm:$0xf]
        %v290 = vld [vmem:[#allocation2 + $0x8] sm:$0xf]
        %v291 = vld [vmem:[#allocation2 + $0xc] sm:$0xf]
        %v292 = vld [vmem:[#allocation2 + $0x10] sm:$0xf]
        %v293 = vld [vmem:[#allocation2 + $0x14] sm:$0xf]
        %v294 = vld [vmem:[#allocation2 + $0x18] sm:$0xf]
        %v295 = vld [vmem:[#allocation2 + $0x1c] sm:$0xf]
        %v296 = vld [vmem:[#allocation2 + $0x20] sm:$0xf]
        %v297 = vld [vmem:[#allocation2 + $0x24] sm:$0xf]
        %v298 = vld [vmem:[#allocation2 + $0x28] sm:$0xf]
        %v299 = vld [vmem:[#allocation2 + $0x2c] sm:$0xf]
        %v300 = vld [vmem:[#allocation2 + $0x30] sm:$0xf]
        %v301 = vld [vmem:[#allocation2 + $0x34] sm:$0xf]
        %v302 = vld [vmem:[#allocation2 + $0x38] sm:$0xf]
        %v303 = vld [vmem:[#allocation2 + $0x3c] sm:$0xf]
        %v304 = vld [vmem:[#allocation2 + $0x40] sm:$0xf]
        %v305 = vld [vmem:[#allocation2 + $0x44] sm:$0xf]
        %v306 = vld [vmem:[#allocation2 + $0x48] sm:$0xf]
        %v307 = vld [vmem:[#allocation2 + $0x4c] sm:$0xf]
        %v308 = vld [vmem:[#allocation2 + $0x50] sm:$0xf]
        %v309 = vld [vmem:[#allocation2 + $0x54] sm:$0xf]
        %v310 = vld [vmem:[#allocation2 + $0x58] sm:$0xf]
        %v311 = vld [vmem:[#allocation2 + $0x5c] sm:$0xf]
        %v312 = vld [vmem:[%s3] sm:$0x1]
        %v313 = vld [vmem:[%s276] sm:$0xf]
        %v315 = vlaneseq
        %v316 = vshrl.u32 %v315, 7
        %v317 = vsub.s32 0, %v316
        %v318 = vrot.slane %v312, %v317
        %v322 = vunpack.c.l.s4 1983009808
        %v323 = vunpack.c.0.s8 %v322
        %v324 = vlaneseq
        %v325 = vshrl.u32 %v324, 7
        %v326 = vsub.s32 %v323, %v325
        %v327 = vrot.slane %v313, %v326
        %v328 = vcombine.high %v327, %v327
        %v354 = vunpack.c.l.b16 %v288
        %v355 = vunpack.c.l.b16 %v289
        %v356 = vunpack.c.l.b16 %v290
        %v357 = vunpack.c.l.b16 %v291
        %v358 = vunpack.c.l.b16 %v292
        %v359 = vunpack.c.l.b16 %v293
        %v360 = vunpack.c.l.b16 %v294
        %v361 = vunpack.c.l.b16 %v295
        %v362 = vunpack.c.l.b16 %v296
        %v363 = vunpack.c.l.b16 %v297
        %v364 = vunpack.c.l.b16 %v298
        %v365 = vunpack.c.l.b16 %v299
        %v366 = vunpack.c.l.b16 %v300
        %v367 = vunpack.c.l.b16 %v301
        %v368 = vunpack.c.l.b16 %v302
        %v369 = vunpack.c.l.b16 %v303
        %v370 = vunpack.c.l.b16 %v304
        %v371 = vunpack.c.l.b16 %v305
        %v372 = vunpack.c.l.b16 %v306
        %v373 = vunpack.c.l.b16 %v307
        %v374 = vunpack.c.l.b16 %v308
        %v375 = vunpack.c.l.b16 %v309
        %v376 = vunpack.c.l.b16 %v310
        %v377 = vunpack.c.l.b16 %v311
        %v378 = vpack.c.b16 %v355, %v354
        %v379 = vpack.c.b16 %v357, %v356
        %v380 = vpack.c.b16 %v359, %v358
        %v381 = vpack.c.b16 %v361, %v360
        %v382 = vpack.c.b16 %v363, %v362
        %v383 = vpack.c.b16 %v365, %v364
        %v384 = vpack.c.b16 %v367, %v366
        %v385 = vpack.c.b16 %v369, %v368
        %v386 = vpack.c.b16 %v371, %v370
        %v387 = vpack.c.b16 %v373, %v372
        %v388 = vpack.c.b16 %v375, %v374
        %v389 = vpack.c.b16 %v377, %v376
        %vm402 = vcmask 523264
        %v404 = vsel %vm402, %v328, 0
        %406 = vmatprep.subr.bf16.mxu0 0
        %407 = vmatpush1.bf16.msra.mxu0 %v378
        %408 = vmatprep.subr.bf16.mxu0 0
        %409 = vmatpush1.bf16.msra.mxu0 %v379
        %410 = vmatprep.subr.bf16.mxu0 0
        %411 = vmatpush1.bf16.msra.mxu0 %v380
        %412 = vmatprep.subr.bf16.mxu0 0
        %413 = vmatpush1.bf16.msra.mxu0 %v381
        %414 = vmatprep.subr.bf16.mxu0 0
        %415 = vmatpush1.bf16.msra.mxu0 %v382
        %416 = vmatprep.subr.bf16.mxu0 0
        %417 = vmatpush1.bf16.msra.mxu0 %v383
        %418 = vmatprep.subr.bf16.mxu0 0
        %419 = vmatpush1.bf16.msra.mxu0 %v384
        %420 = vmatprep.subr.bf16.mxu0 0
        %421 = vmatpush1.bf16.msra.mxu0 %v385
        %422 = vmatprep.subr.bf16.mxu0 0
        %423 = vmatpush1.bf16.msra.mxu0 %v386
        %424 = vmatprep.subr.bf16.mxu0 0
        %425 = vmatpush1.bf16.msra.mxu0 %v387
        %426 = vmatprep.subr.bf16.mxu0 0
        %427 = vmatpush1.bf16.msra.mxu0 %v388
        %428 = vmatprep.subr.bf16.mxu0 0
        %429 = vmatpush1.bf16.msra.mxu0 %v389
        %430 = vmatprep.subr.bf16.mxu0 0
        %431 = vmatpush1.bf16.msra.mxu0 0
        %432 = vmatprep.subr.bf16.mxu0 0
        %433 = vmatpush1.bf16.msra.mxu0 0
        %434 = vmatprep.subr.bf16.mxu0 0
        %435 = vmatpush1.bf16.msra.mxu0 0
        %436 = vmatprep.subr.bf16.mxu0 0
        %437 = vmatpush1.bf16.msra.mxu0 0
        %438 = vmatprep.mubr.bf16.mxu0 %v404
        %439 = vmatmul.mubr.bf16.gmra.mrb[0].mxu0 %v327
        %v440 = vpop.f32.mrb[0].mxu0
        %v441 = vadd.f32 %v318, %v440
        %v442 = vpop.f32.mrb[0].mxu0
        %v443 = vpop.f32.mrb[0].mxu0
        %v444 = vpop.f32.mrb[0].mxu0
        %445 = vdwg.mxu0
        %v446 = vld [vmem:[%s281] sm:$0xf]
        %v449 = vunpack.c.l.s4 1983009808
        %v450 = vunpack.c.0.s8 %v449
        %v451 = vlaneseq
        %v452 = vshrl.u32 %v451, 7
        %v453 = vsub.s32 %v450, %v452
        %v454 = vrot.slane %v446, %v453
        %v455 = vcombine.high %v454, %v454
        %v458 = vsel %vm402, %v455, 0
        %460 = vmatprep.subr.bf16.mxu0 0
        %461 = vmatpush1.bf16.msra.mxu0 %v378
        %462 = vmatprep.subr.bf16.mxu0 0
        %463 = vmatpush1.bf16.msra.mxu0 %v379
        %464 = vmatprep.subr.bf16.mxu0 0
        %465 = vmatpush1.bf16.msra.mxu0 %v380
        %466 = vmatprep.subr.bf16.mxu0 0
        %467 = vmatpush1.bf16.msra.mxu0 %v381
        %468 = vmatprep.subr.bf16.mxu0 0
        %469 = vmatpush1.bf16.msra.mxu0 %v382
        %470 = vmatprep.subr.bf16.mxu0 0
        %471 = vmatpush1.bf16.msra.mxu0 %v383
        %472 = vmatprep.subr.bf16.mxu0 0
        %473 = vmatpush1.bf16.msra.mxu0 %v384
        %474 = vmatprep.subr.bf16.mxu0 0
        %475 = vmatpush1.bf16.msra.mxu0 %v385
        %476 = vmatprep.subr.bf16.mxu0 0
        %477 = vmatpush1.bf16.msra.mxu0 %v386
        %478 = vmatprep.subr.bf16.mxu0 0
        %479 = vmatpush1.bf16.msra.mxu0 %v387
        %480 = vmatprep.subr.bf16.mxu0 0
        %481 = vmatpush1.bf16.msra.mxu0 %v388
        %482 = vmatprep.subr.bf16.mxu0 0
        %483 = vmatpush1.bf16.msra.mxu0 %v389
        %484 = vmatprep.subr.bf16.mxu0 0
        %485 = vmatpush1.bf16.msra.mxu0 0
        %486 = vmatprep.subr.bf16.mxu0 0
        %487 = vmatpush1.bf16.msra.mxu0 0
        %488 = vmatprep.subr.bf16.mxu0 0
        %489 = vmatpush1.bf16.msra.mxu0 0
        %490 = vmatprep.subr.bf16.mxu0 0
        %491 = vmatpush1.bf16.msra.mxu0 0
        %492 = vmatprep.mubr.bf16.mxu0 %v458
        %493 = vmatmul.mubr.bf16.gmra.mrb[0].mxu0 %v454
        %v494 = vpop.f32.mrb[0].mxu0
        %v495 = vadd.f32 %v318, %v494
        %v496 = vpop.f32.mrb[0].mxu0
        %v497 = vpop.f32.mrb[0].mxu0
        %v498 = vpop.f32.mrb[0].mxu0
        %499 = vdwg.mxu0
        %v500 = vld [vmem:[%s4] sm:$0x1]
        %v502 = vrot.slane %v441, 7
        %v505 = vrot.slane %v495, 3
        %vm507 = vcmask 1040384
        %v508 = vsel %vm507, %v500, %v502
        %vm509 = vcmask 1044480
        %v510 = vsel %vm509, %v508, %v505
        %v511 = vld [vmem:[%s5] sm:$0xff]
        %v512 = vld [vmem:[%s5 + $0x8] sm:$0x1]
        %v513 = vadd.f32 %v510, %v511
        %v514 = vadd.f32 %v505, %v512
        %515 = vst [vmem:[%s286] sm:$0xff] %v513
        %516 = vst [vmem:[%s286 + $0x8] sm:$0x1] %v514
        %p517 = scmp.lt.s32.totalorder %s18, 1
        %s518 = scalar_select %p517, %s18, 1
        %s519 = smul.addr %s518, 2
        %s520 = smul.addr %s519, 8
        %s521 = scalar_lea.vmem %s6, %s520
        // Predicated region
        $region49: #{tpu_custom_call.1} parent=43 // pred_check
          %p522 = pneg %p172
        $region50: #{tpu_custom_call.1} parent=43 // pred_check_branch
          %524 = sbr.rel (%p522) target = $region52
        $region51: #{tpu_custom_call.1} parent=43 // pred_region
          _
        $region52: #{tpu_custom_call.1} parent=43 // pred_fallthru
          _
      $region44: #{tpu_custom_call.1} parent=5 // pred_fallthru
        _
      %p525 = scmp.le.s32.totalorder 2, %s13
      // Predicated region
      $region53: #{tpu_custom_call.1} parent=5 // pred_check
        %p526 = pneg %p525
      $region54: #{tpu_custom_call.1} parent=5 // pred_check_branch
        %528 = sbr.rel (%p526) target = $region56
      $region55: #{tpu_custom_call.1} parent=5 // pred_region
        %s529 = ssub.s32 %s13, 2
        // Predicated region
        $region57: #{tpu_custom_call.1} parent=55 // pred_check
          %p530 = pneg %p178
        $region58: #{tpu_custom_call.1} parent=55 // pred_check_branch
          %532 = sbr.rel (%p530) target = $region60
        $region59: #{tpu_custom_call.1} parent=55 // pred_region
          %p533 = scmp.lt.s32.totalorder %s19, 1
          %s534 = scalar_select %p533, %s19, 1
          %s535 = smul.addr %s534, 2
          %s536 = smul.addr %s535, 8
          %s537 = scalar_lea.vmem %s6, %s536
        $region60: #{tpu_custom_call.1} parent=55 // pred_fallthru
          _
      $region56: #{tpu_custom_call.1} parent=5 // pred_fallthru
        _
    $region6: #{tpu_custom_call.1} parent=1 // loop_footer
      %s17 = sadd.s32 1, %s13
    $region7: #{tpu_custom_call.1} parent=1 // loop_footer_branch
      %12 = sbr.rel target = $region3
    $region8: #{tpu_custom_call.1} parent=1 // loop_exit
      _
    %538 = vsyncpa [#allocation3], 1
    %s539 = scalar_lea.sflag [#allocation3], 1
    %540 = vsyncpa %s539, 1

</llo_original>
